<compile_context>
chip_gen: v6e
topology: v6e:2x2x1
jax: 0.10.0
libtpu: 0.0.40
codegen_flags: <defaults>
</compile_context>

<pallas_src>
import functools

import jax
import jax.numpy as jnp
from jax.experimental import pallas as pl
from jax.experimental.pallas import tpu as pltpu


# ----------------------------- helpers ------------------------------

def _round_up(x, m):
    return (x + m - 1) // m * m


def _elu(z):
    # ELU with alpha=1 (matches F.elu defaults).
    return jnp.where(z > 0, z, jnp.exp(z) - 1.0)


# ----------------------------- Pallas kernel ------------------------------

def _make_mlp_elu_kernel(n_layers):
    """Fused MLP: n_layers x (x @ W + b -> ELU). Refs: x, W0..Wk, b0..bk, out."""

    def kernel(*refs):
        x_ref = refs[0]
        w_refs = refs[1:1 + n_layers]
        b_refs = refs[1 + n_layers:1 + 2 * n_layers]
        o_ref = refs[-1]

        h = x_ref[...]
        for w_ref, b_ref in zip(w_refs, b_refs):
            z = jnp.dot(h, w_ref[...], preferred_element_type=jnp.float32) + b_ref[...]
            h = _elu(z)
        o_ref[...] = h

    return kernel


# ----------------------------- wrapper ------------------------------

def regression_net2_forward(x, padded_params, *, out_features, tm=128):
    """Forward pass of RegressionNet2 (all layers fused in one pallas_call).

    x: (N, in_features) float32.
    padded_params: list of (W_pad, b_pad), each lane-padded to multiples of 128.
    """
    n, d_in = x.shape
    n_layers = len(padded_params)
    d_in_pad = padded_params[0][0].shape[0]
    d_out_pad = padded_params[-1][0].shape[1]

    # Row tile: at least one (8, 128) vreg tall, at most `tm`; pad batch to a multiple.
    tm = min(tm, _round_up(n, 8))
    n_pad = _round_up(n, tm)
    x_pad = jnp.zeros((n_pad, d_in_pad), jnp.float32).at[:n, :d_in].set(x)

    ws = [p[0] for p in padded_params]
    bs = [p[1] for p in padded_params]

    in_specs = [pl.BlockSpec((tm, d_in_pad), lambda i: (i, 0))]
    in_specs += [pl.BlockSpec(w.shape, lambda i: (0, 0)) for w in ws]
    in_specs += [pl.BlockSpec(b.shape, lambda i: (0, 0)) for b in bs]

    out_pad = pl.pallas_call(
        _make_mlp_elu_kernel(n_layers),
        out_shape=jax.ShapeDtypeStruct((n_pad, d_out_pad), jnp.float32),
        grid=(n_pad // tm,),
        in_specs=in_specs,
        out_specs=pl.BlockSpec((tm, d_out_pad), lambda i: (i, 0)),
        compiler_params=pltpu.CompilerParams(dimension_semantics=("parallel",)),
    )(x_pad, *ws, *bs)

    return out_pad[:n, :out_features]


# ----------------------------- parameters ------------------------------

def init_params(key, in_features=1, out_features=1, hidden=5, hiddenlayers=1):
    """PyTorch-style Linear init: U(-1/sqrt(fan_in), 1/sqrt(fan_in)) for W and b.

    Layers: fc1 (in->hidden), hiddenlayers x (hidden->hidden), output (hidden->out).
    Weights stored as (fan_in, fan_out) so the kernel computes x @ W + b.
    """
    layer_dims = ([(in_features, hidden)]
                  + [(hidden, hidden)] * hiddenlayers
                  + [(hidden, out_features)])
    params = []
    for fan_in, fan_out in layer_dims:
        key, kw, kb = jax.random.split(key, 3)
        bound = 1.0 / (fan_in ** 0.5)
        w = jax.random.uniform(kw, (fan_in, fan_out), jnp.float32, -bound, bound)
        b = jax.random.uniform(kb, (1, fan_out), jnp.float32, -bound, bound)
        params.append((w, b))
    return params


def pad_params(params, lane=128):
    """Zero-pad every layer to 128-wide lane-dense tiles (exact: elu(0) == 0)."""
    padded = []
    for w, b in params:
        fi, fo = w.shape
        fi_p, fo_p = _round_up(fi, lane), _round_up(fo, lane)
        w_p = jnp.zeros((fi_p, fo_p), jnp.float32).at[:fi, :fo].set(w)
        b_p = jnp.zeros((1, fo_p), jnp.float32).at[:, :fo].set(b)
        padded.append((w_p, b_p))
    return padded


# ------------------------------- main -----------------------------------

if __name__ == "__main__":
    key = jax.random.PRNGKey(0)
    kx, kp = jax.random.split(key)

    # Small shapes consistent with the module defaults (scaled slightly up):
    # batch=8, input=4 features, hidden=32, 2 hidden layers, output=1 (regression).
    batch, in_features, hidden, hiddenlayers, out_features = 8, 4, 32, 2, 1

    x = jax.random.normal(kx, (batch, in_features), dtype=jnp.float32)
    params = init_params(kp, in_features, out_features, hidden, hiddenlayers)
    padded = pad_params(params)

    fwd = jax.jit(functools.partial(regression_net2_forward, out_features=out_features))
    out = jax.block_until_ready(fwd(x, padded))
    assert out.shape == (batch, out_features), out.shape

    # Pure-JAX reference (identical semantics to RegressionNet2.forward).
    def ref_forward(xv, ps):
        h = xv
        for w, b in ps:
            z = h @ w + b
            h = jnp.where(z > 0, z, jnp.exp(z) - 1.0)
        return h

    ref = ref_forward(x, params)
    assert bool(jnp.allclose(out, ref, atol=1e-5, rtol=1e-5)), (out, ref)
    print("KERNEL_OK")
</pallas_src>

<mosaic_0001>
module attributes {stable_mosaic.version = 11 : i64} {
  func.func @kernel(%arg0: i32, %arg1: memref<8x128xf32, #tpu.memory_space<vmem>>, %arg2: memref<128x128xf32, #tpu.memory_space<vmem>>, %arg3: memref<128x128xf32, #tpu.memory_space<vmem>>, %arg4: memref<128x128xf32, #tpu.memory_space<vmem>>, %arg5: memref<128x128xf32, #tpu.memory_space<vmem>>, %arg6: memref<1x128xf32, #tpu.memory_space<vmem>>, %arg7: memref<1x128xf32, #tpu.memory_space<vmem>>, %arg8: memref<1x128xf32, #tpu.memory_space<vmem>>, %arg9: memref<1x128xf32, #tpu.memory_space<vmem>>, %arg10: memref<8x128xf32, #tpu.memory_space<vmem>>) attributes {dimension_semantics = [#tpu.dimension_semantics<parallel>], iteration_bounds = array<i64: 1>, scalar_prefetch = 0 : i64, scratch_operands = 0 : i64, tpu.core_type = #tpu.core_type<tc>, window_params = [{transform_indices = @transform_0, window_bounds = array<i64: 8, 128>}, {pipeline_mode = #tpu.pipeline_mode<synchronous>, transform_indices = @transform_1, window_bounds = array<i64: 128, 128>}, {pipeline_mode = #tpu.pipeline_mode<synchronous>, transform_indices = @transform_2, window_bounds = array<i64: 128, 128>}, {pipeline_mode = #tpu.pipeline_mode<synchronous>, transform_indices = @transform_3, window_bounds = array<i64: 128, 128>}, {pipeline_mode = #tpu.pipeline_mode<synchronous>, transform_indices = @transform_4, window_bounds = array<i64: 128, 128>}, {pipeline_mode = #tpu.pipeline_mode<synchronous>, transform_indices = @transform_5, window_bounds = array<i64: 1, 128>}, {pipeline_mode = #tpu.pipeline_mode<synchronous>, transform_indices = @transform_6, window_bounds = array<i64: 1, 128>}, {pipeline_mode = #tpu.pipeline_mode<synchronous>, transform_indices = @transform_7, window_bounds = array<i64: 1, 128>}, {pipeline_mode = #tpu.pipeline_mode<synchronous>, transform_indices = @transform_8, window_bounds = array<i64: 1, 128>}, {transform_indices = @transform_9, window_bounds = array<i64: 8, 128>}]} {
    %c0 = arith.constant 0 : index
    %c0_0 = arith.constant 0 : index
    %0 = vector.load %arg1[%c0, %c0_0] : memref<8x128xf32, #tpu.memory_space<vmem>>, vector<8x128xf32>
    %c0_1 = arith.constant 0 : index
    %c0_2 = arith.constant 0 : index
    %1 = vector.load %arg2[%c0_1, %c0_2] : memref<128x128xf32, #tpu.memory_space<vmem>>, vector<128x128xf32>
    %cst = arith.constant dense<0.000000e+00> : vector<8x128xf32>
    %2 = tpu.matmul %0, %1, %cst {dimension_numbers = #tpu.dot_dimension_numbers<[1], [0], [0], [1], [0, 0, 1, 1], [], []>} : vector<8x128xf32>, vector<128x128xf32>, vector<8x128xf32> -> vector<8x128xf32>
    %c0_3 = arith.constant 0 : index
    %c0_4 = arith.constant 0 : index
    %3 = vector.load %arg6[%c0_3, %c0_4] : memref<1x128xf32, #tpu.memory_space<vmem>>, vector<1x128xf32>
    %4 = vector.broadcast %3 : vector<1x128xf32> to vector<8x128xf32>
    %5 = arith.addf %2, %4 : vector<8x128xf32>
    %cst_5 = arith.constant 0.000000e+00 : f32
    %6 = vector.broadcast %cst_5 : f32 to vector<8x128xf32>
    %7 = arith.cmpf ogt, %5, %6 : vector<8x128xf32>
    %8 = math.exp %5 : vector<8x128xf32>
    %cst_6 = arith.constant 1.000000e+00 : f32
    %9 = vector.broadcast %cst_6 : f32 to vector<8x128xf32>
    %10 = arith.subf %8, %9 : vector<8x128xf32>
    %11 = arith.select %7, %5, %10 : vector<8x128xi1>, vector<8x128xf32>
    %c0_7 = arith.constant 0 : index
    %c0_8 = arith.constant 0 : index
    %12 = vector.load %arg3[%c0_7, %c0_8] : memref<128x128xf32, #tpu.memory_space<vmem>>, vector<128x128xf32>
    %cst_9 = arith.constant dense<0.000000e+00> : vector<8x128xf32>
    %13 = tpu.matmul %11, %12, %cst_9 {dimension_numbers = #tpu.dot_dimension_numbers<[1], [0], [0], [1], [0, 0, 1, 1], [], []>} : vector<8x128xf32>, vector<128x128xf32>, vector<8x128xf32> -> vector<8x128xf32>
    %c0_10 = arith.constant 0 : index
    %c0_11 = arith.constant 0 : index
    %14 = vector.load %arg7[%c0_10, %c0_11] : memref<1x128xf32, #tpu.memory_space<vmem>>, vector<1x128xf32>
    %15 = vector.broadcast %14 : vector<1x128xf32> to vector<8x128xf32>
    %16 = arith.addf %13, %15 : vector<8x128xf32>
    %cst_12 = arith.constant 0.000000e+00 : f32
    %17 = vector.broadcast %cst_12 : f32 to vector<8x128xf32>
    %18 = arith.cmpf ogt, %16, %17 : vector<8x128xf32>
    %19 = math.exp %16 : vector<8x128xf32>
    %cst_13 = arith.constant 1.000000e+00 : f32
    %20 = vector.broadcast %cst_13 : f32 to vector<8x128xf32>
    %21 = arith.subf %19, %20 : vector<8x128xf32>
    %22 = arith.select %18, %16, %21 : vector<8x128xi1>, vector<8x128xf32>
    %c0_14 = arith.constant 0 : index
    %c0_15 = arith.constant 0 : index
    %23 = vector.load %arg4[%c0_14, %c0_15] : memref<128x128xf32, #tpu.memory_space<vmem>>, vector<128x128xf32>
    %cst_16 = arith.constant dense<0.000000e+00> : vector<8x128xf32>
    %24 = tpu.matmul %22, %23, %cst_16 {dimension_numbers = #tpu.dot_dimension_numbers<[1], [0], [0], [1], [0, 0, 1, 1], [], []>} : vector<8x128xf32>, vector<128x128xf32>, vector<8x128xf32> -> vector<8x128xf32>
    %c0_17 = arith.constant 0 : index
    %c0_18 = arith.constant 0 : index
    %25 = vector.load %arg8[%c0_17, %c0_18] : memref<1x128xf32, #tpu.memory_space<vmem>>, vector<1x128xf32>
    %26 = vector.broadcast %25 : vector<1x128xf32> to vector<8x128xf32>
    %27 = arith.addf %24, %26 : vector<8x128xf32>
    %cst_19 = arith.constant 0.000000e+00 : f32
    %28 = vector.broadcast %cst_19 : f32 to vector<8x128xf32>
    %29 = arith.cmpf ogt, %27, %28 : vector<8x128xf32>
    %30 = math.exp %27 : vector<8x128xf32>
    %cst_20 = arith.constant 1.000000e+00 : f32
    %31 = vector.broadcast %cst_20 : f32 to vector<8x128xf32>
    %32 = arith.subf %30, %31 : vector<8x128xf32>
    %33 = arith.select %29, %27, %32 : vector<8x128xi1>, vector<8x128xf32>
    %c0_21 = arith.constant 0 : index
    %c0_22 = arith.constant 0 : index
    %34 = vector.load %arg5[%c0_21, %c0_22] : memref<128x128xf32, #tpu.memory_space<vmem>>, vector<128x128xf32>
    %cst_23 = arith.constant dense<0.000000e+00> : vector<8x128xf32>
    %35 = tpu.matmul %33, %34, %cst_23 {dimension_numbers = #tpu.dot_dimension_numbers<[1], [0], [0], [1], [0, 0, 1, 1], [], []>} : vector<8x128xf32>, vector<128x128xf32>, vector<8x128xf32> -> vector<8x128xf32>
    %c0_24 = arith.constant 0 : index
    %c0_25 = arith.constant 0 : index
    %36 = vector.load %arg9[%c0_24, %c0_25] : memref<1x128xf32, #tpu.memory_space<vmem>>, vector<1x128xf32>
    %37 = vector.broadcast %36 : vector<1x128xf32> to vector<8x128xf32>
    %38 = arith.addf %35, %37 : vector<8x128xf32>
    %cst_26 = arith.constant 0.000000e+00 : f32
    %39 = vector.broadcast %cst_26 : f32 to vector<8x128xf32>
    %40 = arith.cmpf ogt, %38, %39 : vector<8x128xf32>
    %41 = math.exp %38 : vector<8x128xf32>
    %cst_27 = arith.constant 1.000000e+00 : f32
    %42 = vector.broadcast %cst_27 : f32 to vector<8x128xf32>
    %43 = arith.subf %41, %42 : vector<8x128xf32>
    %44 = arith.select %40, %38, %43 : vector<8x128xi1>, vector<8x128xf32>
    %c0_28 = arith.constant 0 : index
    %c0_29 = arith.constant 0 : index
    %45 = vector.load %arg10[%c0_28, %c0_29] : memref<8x128xf32, #tpu.memory_space<vmem>>, vector<8x128xf32>
    tpu.vector_store %arg10[%c0_28, %c0_29], %44 {strides = array<i32>} : memref<8x128xf32, #tpu.memory_space<vmem>>, vector<8x128xf32>,
    return
  }
  func.func @transform_0(%arg0: i32) -> (i32, i32) {
    %c0_i32 = arith.constant 0 : i32
    %c0_i32_0 = arith.constant 0 : i32
    return %arg0, %c0_i32 : i32, i32
  }
  func.func @transform_1(%arg0: i32) -> (i32, i32) {
    %c0_i32 = arith.constant 0 : i32
    %c0_i32_0 = arith.constant 0 : i32
    %c0_i32_1 = arith.constant 0 : i32
    return %c0_i32, %c0_i32_0 : i32, i32
  }
  func.func @transform_2(%arg0: i32) -> (i32, i32) {
    %c0_i32 = arith.constant 0 : i32
    %c0_i32_0 = arith.constant 0 : i32
    %c0_i32_1 = arith.constant 0 : i32
    return %c0_i32, %c0_i32_0 : i32, i32
  }
  func.func @transform_3(%arg0: i32) -> (i32, i32) {
    %c0_i32 = arith.constant 0 : i32
    %c0_i32_0 = arith.constant 0 : i32
    %c0_i32_1 = arith.constant 0 : i32
    return %c0_i32, %c0_i32_0 : i32, i32
  }
  func.func @transform_4(%arg0: i32) -> (i32, i32) {
    %c0_i32 = arith.constant 0 : i32
    %c0_i32_0 = arith.constant 0 : i32
    %c0_i32_1 = arith.constant 0 : i32
    return %c0_i32, %c0_i32_0 : i32, i32
  }
  func.func @transform_5(%arg0: i32) -> (i32, i32) {
    %c0_i32 = arith.constant 0 : i32
    %c0_i32_0 = arith.constant 0 : i32
    %c0_i32_1 = arith.constant 0 : i32
    return %c0_i32, %c0_i32_0 : i32, i32
  }
  func.func @transform_6(%arg0: i32) -> (i32, i32) {
    %c0_i32 = arith.constant 0 : i32
    %c0_i32_0 = arith.constant 0 : i32
    %c0_i32_1 = arith.constant 0 : i32
    return %c0_i32, %c0_i32_0 : i32, i32
  }
  func.func @transform_7(%arg0: i32) -> (i32, i32) {
    %c0_i32 = arith.constant 0 : i32
    %c0_i32_0 = arith.constant 0 : i32
    %c0_i32_1 = arith.constant 0 : i32
    return %c0_i32, %c0_i32_0 : i32, i32
  }
  func.func @transform_8(%arg0: i32) -> (i32, i32) {
    %c0_i32 = arith.constant 0 : i32
    %c0_i32_0 = arith.constant 0 : i32
    %c0_i32_1 = arith.constant 0 : i32
    return %c0_i32, %c0_i32_0 : i32, i32
  }
  func.func @transform_9(%arg0: i32) -> (i32, i32) {
    %c0_i32 = arith.constant 0 : i32
    %c0_i32_0 = arith.constant 0 : i32
    return %arg0, %c0_i32 : i32, i32
  }
}

</mosaic_0001>

<llo_original>
// kernel: regression_net2_forward.1
$region0: #{regression_net2_forward.1}
  #allocation0 [shape = 'u32[]', space=smem, size = 0x4, offset = 0x4, fixed_abs, tag = 'smem constant byte address 0x4 - core index']
  #allocation1 [shape = 'u32[144,128]{1,0:T(1,128)}', space=vmem, size = 0x12000, scoped, tag = 'internal scratch']
  %s0 = inlined_call_operand.vmem [shape: f32[8,128], index: 0, kind: input, shape index: {}]
  %s1 = inlined_call_operand.hbm [shape: f32[128,128], index: 1, kind: input, shape index: {}]
  %s2 = inlined_call_operand.hbm [shape: f32[128,128], index: 2, kind: input, shape index: {}]
  %s3 = inlined_call_operand.hbm [shape: f32[128,128], index: 3, kind: input, shape index: {}]
  %s4 = inlined_call_operand.hbm [shape: f32[128,128], index: 4, kind: input, shape index: {}]
  %s5 = inlined_call_operand.vmem [shape: f32[1,128], index: 5, kind: input, shape index: {}]
  %s6 = inlined_call_operand.vmem [shape: f32[1,128], index: 6, kind: input, shape index: {}]
  %s7 = inlined_call_operand.vmem [shape: f32[1,128], index: 7, kind: input, shape index: {}]
  %s8 = inlined_call_operand.vmem [shape: f32[1,128], index: 8, kind: input, shape index: {}]
  %s9 = inlined_call_operand.vmem [shape: f32[8,128], index: 9, kind: output, shape index: {}]
  %s10 = sld [smem:[#allocation0]]
  $region62: #{regression_net2_forward.1} parent=0
    _
  %s12 = ssub.s32 1, %s10
  %s13 = scalar_select 0, %s12, %s10
  $region1: #{regression_net2_forward.1} parent=0
    #allocation2 [shape = 'u8[65536]{0}', space=vmem, size = 0x10000, scoped, tag = 'input window, operand 1, single buffered']
    #allocation3 [shape = 's32[1]{0}', space=sflag, size = 0x4, scoped, tag = 'scoped memory for regression_net2_forward.1']
    #allocation4 [shape = 'u8[65536]{0}', space=vmem, size = 0x10000, scoped, tag = 'input window, operand 2, single buffered']
    #allocation5 [shape = 's32[1]{0}', space=sflag, size = 0x4, scoped, tag = 'scoped memory for regression_net2_forward.1']
    #allocation6 [shape = 'u8[65536]{0}', space=vmem, size = 0x10000, scoped, tag = 'input window, operand 3, single buffered']
    #allocation7 [shape = 'u8[65536]{0}', space=vmem, size = 0x10000, scoped, tag = 'input window, operand 4, single buffered']
    #allocation8 [shape = 's32[1]{0}', space=sflag, size = 0x4, scoped, tag = 'scoped memory for regression_net2_forward.1']
    %14 = vsyncpa [#allocation3], 0
    %15 = vsyncpa [#allocation5], 0
    %16 = vsyncpa [#allocation8], 0
    // Predicated region
    $region2: #{regression_net2_forward.1} parent=1 // pred_check
      _
    $region3: #{regression_net2_forward.1} parent=1 // pred_check_branch
      %18 = sbr.rel (0) target = $region5
    $region4: #{regression_net2_forward.1} parent=1 // pred_region
      _
    $region5: #{regression_net2_forward.1} parent=1 // pred_fallthru
      _
    // Predicated region
    $region6: #{regression_net2_forward.1} parent=1 // pred_check
      _
    $region7: #{regression_net2_forward.1} parent=1 // pred_check_branch
      %20 = sbr.rel (0) target = $region9
    $region8: #{regression_net2_forward.1} parent=1 // pred_region
      %s22 = ssub.s32 2048, 2048
      %23 = vsyncadd [#allocation3], %s22
      %s24 = sshll.u32 [#allocation2], 4
      %s25 = int_to_ptr.vmem [resolvable:$true] %s24
      %30 = dma.hbm_to_vmem [thread:$0]  %s1, 2048, %s25, [#allocation3], 128, 128, 8
    $region9: #{regression_net2_forward.1} parent=1 // pred_fallthru
      _
    // Predicated region
    $region10: #{regression_net2_forward.1} parent=1 // pred_check
      _
    $region11: #{regression_net2_forward.1} parent=1 // pred_check_branch
      %32 = sbr.rel (0) target = $region13
    $region12: #{regression_net2_forward.1} parent=1 // pred_region
      %s34 = ssub.s32 2048, 2048
      %35 = vsyncadd [#allocation5], %s34
      %s36 = sshll.u32 [#allocation4], 4
      %s37 = int_to_ptr.vmem [resolvable:$true] %s36
      %42 = dma.hbm_to_vmem [thread:$0]  %s2, 2048, %s37, [#allocation5], 128, 128, 8
    $region13: #{regression_net2_forward.1} parent=1 // pred_fallthru
      _
    // Predicated region
    $region14: #{regression_net2_forward.1} parent=1 // pred_check
      _
    $region15: #{regression_net2_forward.1} parent=1 // pred_check_branch
      %44 = sbr.rel (0) target = $region17
    $region16: #{regression_net2_forward.1} parent=1 // pred_region
      %s46 = ssub.s32 2048, 2048
      %47 = vsyncadd [#allocation5], %s46
      %s48 = sshll.u32 [#allocation6], 4
      %s49 = int_to_ptr.vmem [resolvable:$true] %s48
      %54 = dma.hbm_to_vmem [thread:$0]  %s3, 2048, %s49, [#allocation5], 128, 128, 8
    $region17: #{regression_net2_forward.1} parent=1 // pred_fallthru
      _
    // Predicated region
    $region18: #{regression_net2_forward.1} parent=1 // pred_check
      _
    $region19: #{regression_net2_forward.1} parent=1 // pred_check_branch
      %56 = sbr.rel (0) target = $region21
    $region20: #{regression_net2_forward.1} parent=1 // pred_region
      %s58 = ssub.s32 2048, 2048
      %59 = vsyncadd [#allocation8], %s58
      %s60 = sshll.u32 [#allocation7], 4
      %s61 = int_to_ptr.vmem [resolvable:$true] %s60
      %66 = dma.hbm_to_vmem [thread:$0]  %s4, 2048, %s61, [#allocation8], 128, 128, 8
    $region21: #{regression_net2_forward.1} parent=1 // pred_fallthru
      _
    // Predicated region
    $region22: #{regression_net2_forward.1} parent=1 // pred_check
      _
    $region23: #{regression_net2_forward.1} parent=1 // pred_check_branch
      %68 = sbr.rel (0) target = $region25
    $region24: #{regression_net2_forward.1} parent=1 // pred_region
      _
    $region25: #{regression_net2_forward.1} parent=1 // pred_fallthru
      _
    // Predicated region
    $region26: #{regression_net2_forward.1} parent=1 // pred_check
      _
    $region27: #{regression_net2_forward.1} parent=1 // pred_check_branch
      %70 = sbr.rel (0) target = $region29
    $region28: #{regression_net2_forward.1} parent=1 // pred_region
      _
    $region29: #{regression_net2_forward.1} parent=1 // pred_fallthru
      _
    // Predicated region
    $region30: #{regression_net2_forward.1} parent=1 // pred_check
      _
    $region31: #{regression_net2_forward.1} parent=1 // pred_check_branch
      %72 = sbr.rel (0) target = $region33
    $region32: #{regression_net2_forward.1} parent=1 // pred_region
      _
    $region33: #{regression_net2_forward.1} parent=1 // pred_fallthru
      _
    // Predicated region
    $region34: #{regression_net2_forward.1} parent=1 // pred_check
      _
    $region35: #{regression_net2_forward.1} parent=1 // pred_check_branch
      %74 = sbr.rel (0) target = $region37
    $region36: #{regression_net2_forward.1} parent=1 // pred_region
      _
    $region37: #{regression_net2_forward.1} parent=1 // pred_fallthru
      _
    // Predicated region
    $region38: #{regression_net2_forward.1} parent=1 // pred_check
      _
    $region39: #{regression_net2_forward.1} parent=1 // pred_check_branch
      %76 = sbr.rel (0) target = $region41
    $region40: #{regression_net2_forward.1} parent=1 // pred_region
      %77 = dma.done [#allocation3], 2048
    $region41: #{regression_net2_forward.1} parent=1 // pred_fallthru
      _
    // Predicated region
    $region42: #{regression_net2_forward.1} parent=1 // pred_check
      _
    $region43: #{regression_net2_forward.1} parent=1 // pred_check_branch
      %79 = sbr.rel (0) target = $region45
    $region44: #{regression_net2_forward.1} parent=1 // pred_region
      %80 = dma.done [#allocation5], 2048
    $region45: #{regression_net2_forward.1} parent=1 // pred_fallthru
      _
    // Predicated region
    $region46: #{regression_net2_forward.1} parent=1 // pred_check
      _
    $region47: #{regression_net2_forward.1} parent=1 // pred_check_branch
      %82 = sbr.rel (0) target = $region49
    $region48: #{regression_net2_forward.1} parent=1 // pred_region
      %83 = dma.done [#allocation5], 2048
    $region49: #{regression_net2_forward.1} parent=1 // pred_fallthru
      _
    // Predicated region
    $region50: #{regression_net2_forward.1} parent=1 // pred_check
      _
    $region51: #{regression_net2_forward.1} parent=1 // pred_check_branch
      %85 = sbr.rel (0) target = $region53
    $region52: #{regression_net2_forward.1} parent=1 // pred_region
      %86 = dma.done [#allocation8], 2048
    $region53: #{regression_net2_forward.1} parent=1 // pred_fallthru
      _
    %v87 = vld [vmem:[%s0] sm:$0xff]
    %v88 = vld [vmem:[#allocation2] sm:$0xff]
    %v89 = vld [vmem:[#allocation2 + $0x8] sm:$0xff]
    %v90 = vld [vmem:[#allocation2 + $0x10] sm:$0xff]
    %v91 = vld [vmem:[#allocation2 + $0x18] sm:$0xff]
    %v92 = vld [vmem:[#allocation2 + $0x20] sm:$0xff]
    %v93 = vld [vmem:[#allocation2 + $0x28] sm:$0xff]
    %v94 = vld [vmem:[#allocation2 + $0x30] sm:$0xff]
    %v95 = vld [vmem:[#allocation2 + $0x38] sm:$0xff]
    %v96 = vld [vmem:[#allocation2 + $0x40] sm:$0xff]
    %v97 = vld [vmem:[#allocation2 + $0x48] sm:$0xff]
    %v98 = vld [vmem:[#allocation2 + $0x50] sm:$0xff]
    %v99 = vld [vmem:[#allocation2 + $0x58] sm:$0xff]
    %v100 = vld [vmem:[#allocation2 + $0x60] sm:$0xff]
    %v101 = vld [vmem:[#allocation2 + $0x68] sm:$0xff]
    %v102 = vld [vmem:[#allocation2 + $0x70] sm:$0xff]
    %v103 = vld [vmem:[#allocation2 + $0x78] sm:$0xff]
    %v104 = vld [vmem:[%s5] sm:$0x1]
    %v106 = vlaneseq
    %v107 = vshrl.u32 %v106, 7
    %v108 = vsub.s32 0, %v107
    %v109 = vrot.slane %v104, %v108
    %111 = vmatprep.subr.mxu0 0.0
    %112 = vmatpush1.msra.mxu0 %v103
    %113 = vmatprep.subr.mxu0 0.0
    %114 = vmatpush1.msra.mxu0 %v102
    %115 = vmatprep.subr.mxu0 0.0
    %116 = vmatpush1.msra.mxu0 %v101
    %117 = vmatprep.subr.mxu0 0.0
    %118 = vmatpush1.msra.mxu0 %v100
    %119 = vmatprep.subr.mxu0 0.0
    %120 = vmatpush1.msra.mxu0 %v99
    %121 = vmatprep.subr.mxu0 0.0
    %122 = vmatpush1.msra.mxu0 %v98
    %123 = vmatprep.subr.mxu0 0.0
    %124 = vmatpush1.msra.mxu0 %v97
    %125 = vmatprep.subr.mxu0 0.0
    %126 = vmatpush1.msra.mxu0 %v96
    %127 = vmatprep.subr.mxu0 0.0
    %128 = vmatpush1.msra.mxu0 %v95
    %129 = vmatprep.subr.mxu0 0.0
    %130 = vmatpush1.msra.mxu0 %v94
    %131 = vmatprep.subr.mxu0 0.0
    %132 = vmatpush1.msra.mxu0 %v93
    %133 = vmatprep.subr.mxu0 0.0
    %134 = vmatpush1.msra.mxu0 %v92
    %135 = vmatprep.subr.mxu0 0.0
    %136 = vmatpush1.msra.mxu0 %v91
    %137 = vmatprep.subr.mxu0 0.0
    %138 = vmatpush1.msra.mxu0 %v90
    %139 = vmatprep.subr.mxu0 0.0
    %140 = vmatpush1.msra.mxu0 %v89
    %141 = vmatprep.subr.mxu0 0.0
    %142 = vmatpush1.msra.mxu0 %v88
    %143 = vmatprep.subr.mxu0 0.0
    %144 = vmatpush2.msra.mxu0 0.0
    %145 = vmatprep.subr.mxu0 0.0
    %146 = vmatpush2.msra.mxu0 0.0
    %147 = vmatprep.subr.mxu0 0.0
    %148 = vmatpush2.msra.mxu0 0.0
    %149 = vmatprep.subr.mxu0 0.0
    %150 = vmatpush2.msra.mxu0 0.0
    %151 = vmatprep.subr.mxu0 0.0
    %152 = vmatpush2.msra.mxu0 0.0
    %153 = vmatprep.subr.mxu0 0.0
    %154 = vmatpush2.msra.mxu0 0.0
    %155 = vmatprep.subr.mxu0 0.0
    %156 = vmatpush2.msra.mxu0 0.0
    %157 = vmatprep.subr.mxu0 0.0
    %158 = vmatpush2.msra.mxu0 0.0
    %159 = vmatprep.subr.mxu0 0.0
    %160 = vmatpush2.msra.mxu0 0.0
    %161 = vmatprep.subr.mxu0 0.0
    %162 = vmatpush2.msra.mxu0 0.0
    %163 = vmatprep.subr.mxu0 0.0
    %164 = vmatpush2.msra.mxu0 0.0
    %165 = vmatprep.subr.mxu0 0.0
    %166 = vmatpush2.msra.mxu0 0.0
    %167 = vmatprep.subr.mxu0 0.0
    %168 = vmatpush2.msra.mxu0 0.0
    %169 = vmatprep.subr.mxu0 0.0
    %170 = vmatpush2.msra.mxu0 0.0
    %171 = vmatprep.subr.mxu0 0.0
    %172 = vmatpush2.msra.mxu0 0.0
    %173 = vmatprep.subr.mxu0 0.0
    %174 = vmatpush2.msra.mxu0 0.0
    %175 = vmatprep.mubr.f32.mxu0 0.0
    %176 = vmatmul.mubr.f32.gmra.mxu0 %v87
    %v177 = vpop.f32.mrf.mxu0
    %v178 = vadd.f32 %v109, %v177
    %v179 = vpop.f32.mrf.mxu0
    %180 = vdwg.mxu0
    %vm181 = vcmp.gt.f32.partialorder %v178, 0.0
    %v182 = vmul.f32 %v178, 1.442695
    %v183 = vpow.pop %v182
    %v184 = vsub.f32 %v183, 1.0
    %v185 = vsel %vm181, %v178, %v184
    %v186 = vld [vmem:[#allocation4] sm:$0xff]
    %v187 = vld [vmem:[#allocation4 + $0x8] sm:$0xff]
    %v188 = vld [vmem:[#allocation4 + $0x10] sm:$0xff]
    %v189 = vld [vmem:[#allocation4 + $0x18] sm:$0xff]
    %v190 = vld [vmem:[#allocation4 + $0x20] sm:$0xff]
    %v191 = vld [vmem:[#allocation4 + $0x28] sm:$0xff]
    %v192 = vld [vmem:[#allocation4 + $0x30] sm:$0xff]
    %v193 = vld [vmem:[#allocation4 + $0x38] sm:$0xff]
    %v194 = vld [vmem:[#allocation4 + $0x40] sm:$0xff]
    %v195 = vld [vmem:[#allocation4 + $0x48] sm:$0xff]
    %v196 = vld [vmem:[#allocation4 + $0x50] sm:$0xff]
    %v197 = vld [vmem:[#allocation4 + $0x58] sm:$0xff]
    %v198 = vld [vmem:[#allocation4 + $0x60] sm:$0xff]
    %v199 = vld [vmem:[#allocation4 + $0x68] sm:$0xff]
    %v200 = vld [vmem:[#allocation4 + $0x70] sm:$0xff]
    %v201 = vld [vmem:[#allocation4 + $0x78] sm:$0xff]
    %v202 = vld [vmem:[%s6] sm:$0x1]
    %v204 = vlaneseq
    %v205 = vshrl.u32 %v204, 7
    %v206 = vsub.s32 0, %v205
    %v207 = vrot.slane %v202, %v206
    %209 = vmatprep.subr.mxu0 0.0
    %210 = vmatpush1.msra.mxu0 %v201
    %211 = vmatprep.subr.mxu0 0.0
    %212 = vmatpush1.msra.mxu0 %v200
    %213 = vmatprep.subr.mxu0 0.0
    %214 = vmatpush1.msra.mxu0 %v199
    %215 = vmatprep.subr.mxu0 0.0
    %216 = vmatpush1.msra.mxu0 %v198
    %217 = vmatprep.subr.mxu0 0.0
    %218 = vmatpush1.msra.mxu0 %v197
    %219 = vmatprep.subr.mxu0 0.0
    %220 = vmatpush1.msra.mxu0 %v196
    %221 = vmatprep.subr.mxu0 0.0
    %222 = vmatpush1.msra.mxu0 %v195
    %223 = vmatprep.subr.mxu0 0.0
    %224 = vmatpush1.msra.mxu0 %v194
    %225 = vmatprep.subr.mxu0 0.0
    %226 = vmatpush1.msra.mxu0 %v193
    %227 = vmatprep.subr.mxu0 0.0
    %228 = vmatpush1.msra.mxu0 %v192
    %229 = vmatprep.subr.mxu0 0.0
    %230 = vmatpush1.msra.mxu0 %v191
    %231 = vmatprep.subr.mxu0 0.0
    %232 = vmatpush1.msra.mxu0 %v190
    %233 = vmatprep.subr.mxu0 0.0
    %234 = vmatpush1.msra.mxu0 %v189
    %235 = vmatprep.subr.mxu0 0.0
    %236 = vmatpush1.msra.mxu0 %v188
    %237 = vmatprep.subr.mxu0 0.0
    %238 = vmatpush1.msra.mxu0 %v187
    %239 = vmatprep.subr.mxu0 0.0
    %240 = vmatpush1.msra.mxu0 %v186
    %241 = vmatprep.subr.mxu0 0.0
    %242 = vmatpush2.msra.mxu0 0.0
    %243 = vmatprep.subr.mxu0 0.0
    %244 = vmatpush2.msra.mxu0 0.0
    %245 = vmatprep.subr.mxu0 0.0
    %246 = vmatpush2.msra.mxu0 0.0
    %247 = vmatprep.subr.mxu0 0.0
    %248 = vmatpush2.msra.mxu0 0.0
    %249 = vmatprep.subr.mxu0 0.0
    %250 = vmatpush2.msra.mxu0 0.0
    %251 = vmatprep.subr.mxu0 0.0
    %252 = vmatpush2.msra.mxu0 0.0
    %253 = vmatprep.subr.mxu0 0.0
    %254 = vmatpush2.msra.mxu0 0.0
    %255 = vmatprep.subr.mxu0 0.0
    %256 = vmatpush2.msra.mxu0 0.0
    %257 = vmatprep.subr.mxu0 0.0
    %258 = vmatpush2.msra.mxu0 0.0
    %259 = vmatprep.subr.mxu0 0.0
    %260 = vmatpush2.msra.mxu0 0.0
    %261 = vmatprep.subr.mxu0 0.0
    %262 = vmatpush2.msra.mxu0 0.0
    %263 = vmatprep.subr.mxu0 0.0
    %264 = vmatpush2.msra.mxu0 0.0
    %265 = vmatprep.subr.mxu0 0.0
    %266 = vmatpush2.msra.mxu0 0.0
    %267 = vmatprep.subr.mxu0 0.0
    %268 = vmatpush2.msra.mxu0 0.0
    %269 = vmatprep.subr.mxu0 0.0
    %270 = vmatpush2.msra.mxu0 0.0
    %271 = vmatprep.subr.mxu0 0.0
    %272 = vmatpush2.msra.mxu0 0.0
    %273 = vmatprep.mubr.f32.mxu0 0.0
    %274 = vmatmul.mubr.f32.gmra.mxu0 %v185
    %v275 = vpop.f32.mrf.mxu0
    %v276 = vadd.f32 %v207, %v275
    %v277 = vpop.f32.mrf.mxu0
    %278 = vdwg.mxu0
    %vm279 = vcmp.gt.f32.partialorder %v276, 0.0
    %v280 = vmul.f32 %v276, 1.442695
    %v281 = vpow.pop %v280
    %v282 = vsub.f32 %v281, 1.0
    %v283 = vsel %vm279, %v276, %v282
    %v284 = vld [vmem:[#allocation6] sm:$0xff]
    %v285 = vld [vmem:[#allocation6 + $0x8] sm:$0xff]
    %v286 = vld [vmem:[#allocation6 + $0x10] sm:$0xff]
    %v287 = vld [vmem:[#allocation6 + $0x18] sm:$0xff]
    %v288 = vld [vmem:[#allocation6 + $0x20] sm:$0xff]
    %v289 = vld [vmem:[#allocation6 + $0x28] sm:$0xff]
    %v290 = vld [vmem:[#allocation6 + $0x30] sm:$0xff]
    %v291 = vld [vmem:[#allocation6 + $0x38] sm:$0xff]
    %v292 = vld [vmem:[#allocation6 + $0x40] sm:$0xff]
    %v293 = vld [vmem:[#allocation6 + $0x48] sm:$0xff]
    %v294 = vld [vmem:[#allocation6 + $0x50] sm:$0xff]
    %v295 = vld [vmem:[#allocation6 + $0x58] sm:$0xff]
    %v296 = vld [vmem:[#allocation6 + $0x60] sm:$0xff]
    %v297 = vld [vmem:[#allocation6 + $0x68] sm:$0xff]
    %v298 = vld [vmem:[#allocation6 + $0x70] sm:$0xff]
    %v299 = vld [vmem:[#allocation6 + $0x78] sm:$0xff]
    %v300 = vld [vmem:[%s7] sm:$0x1]
    %v302 = vlaneseq
    %v303 = vshrl.u32 %v302, 7
    %v304 = vsub.s32 0, %v303
    %v305 = vrot.slane %v300, %v304
    %307 = vmatprep.subr.mxu0 0.0
    %308 = vmatpush1.msra.mxu0 %v299
    %309 = vmatprep.subr.mxu0 0.0
    %310 = vmatpush1.msra.mxu0 %v298
    %311 = vmatprep.subr.mxu0 0.0
    %312 = vmatpush1.msra.mxu0 %v297
    %313 = vmatprep.subr.mxu0 0.0
    %314 = vmatpush1.msra.mxu0 %v296
    %315 = vmatprep.subr.mxu0 0.0
    %316 = vmatpush1.msra.mxu0 %v295
    %317 = vmatprep.subr.mxu0 0.0
    %318 = vmatpush1.msra.mxu0 %v294
    %319 = vmatprep.subr.mxu0 0.0
    %320 = vmatpush1.msra.mxu0 %v293
    %321 = vmatprep.subr.mxu0 0.0
    %322 = vmatpush1.msra.mxu0 %v292
    %323 = vmatprep.subr.mxu0 0.0
    %324 = vmatpush1.msra.mxu0 %v291
    %325 = vmatprep.subr.mxu0 0.0
    %326 = vmatpush1.msra.mxu0 %v290
    %327 = vmatprep.subr.mxu0 0.0
    %328 = vmatpush1.msra.mxu0 %v289
    %329 = vmatprep.subr.mxu0 0.0
    %330 = vmatpush1.msra.mxu0 %v288
    %331 = vmatprep.subr.mxu0 0.0
    %332 = vmatpush1.msra.mxu0 %v287
    %333 = vmatprep.subr.mxu0 0.0
    %334 = vmatpush1.msra.mxu0 %v286
    %335 = vmatprep.subr.mxu0 0.0
    %336 = vmatpush1.msra.mxu0 %v285
    %337 = vmatprep.subr.mxu0 0.0
    %338 = vmatpush1.msra.mxu0 %v284
    %339 = vmatprep.subr.mxu0 0.0
    %340 = vmatpush2.msra.mxu0 0.0
    %341 = vmatprep.subr.mxu0 0.0
    %342 = vmatpush2.msra.mxu0 0.0
    %343 = vmatprep.subr.mxu0 0.0
    %344 = vmatpush2.msra.mxu0 0.0
    %345 = vmatprep.subr.mxu0 0.0
    %346 = vmatpush2.msra.mxu0 0.0
    %347 = vmatprep.subr.mxu0 0.0
    %348 = vmatpush2.msra.mxu0 0.0
    %349 = vmatprep.subr.mxu0 0.0
    %350 = vmatpush2.msra.mxu0 0.0
    %351 = vmatprep.subr.mxu0 0.0
    %352 = vmatpush2.msra.mxu0 0.0
    %353 = vmatprep.subr.mxu0 0.0
    %354 = vmatpush2.msra.mxu0 0.0
    %355 = vmatprep.subr.mxu0 0.0
    %356 = vmatpush2.msra.mxu0 0.0
    %357 = vmatprep.subr.mxu0 0.0
    %358 = vmatpush2.msra.mxu0 0.0
    %359 = vmatprep.subr.mxu0 0.0
    %360 = vmatpush2.msra.mxu0 0.0
    %361 = vmatprep.subr.mxu0 0.0
    %362 = vmatpush2.msra.mxu0 0.0
    %363 = vmatprep.subr.mxu0 0.0
    %364 = vmatpush2.msra.mxu0 0.0
    %365 = vmatprep.subr.mxu0 0.0
    %366 = vmatpush2.msra.mxu0 0.0
    %367 = vmatprep.subr.mxu0 0.0
    %368 = vmatpush2.msra.mxu0 0.0
    %369 = vmatprep.subr.mxu0 0.0
    %370 = vmatpush2.msra.mxu0 0.0
    %371 = vmatprep.mubr.f32.mxu0 0.0
    %372 = vmatmul.mubr.f32.gmra.mxu0 %v283
    %v373 = vpop.f32.mrf.mxu0
    %v374 = vadd.f32 %v305, %v373
    %v375 = vpop.f32.mrf.mxu0
    %376 = vdwg.mxu0
    %vm377 = vcmp.gt.f32.partialorder %v374, 0.0
    %v378 = vmul.f32 %v374, 1.442695
    %v379 = vpow.pop %v378
    %v380 = vsub.f32 %v379, 1.0
    %v381 = vsel %vm377, %v374, %v380
    %v382 = vld [vmem:[#allocation7] sm:$0xff]
    %v383 = vld [vmem:[#allocation7 + $0x8] sm:$0xff]
    %v384 = vld [vmem:[#allocation7 + $0x10] sm:$0xff]
    %v385 = vld [vmem:[#allocation7 + $0x18] sm:$0xff]
    %v386 = vld [vmem:[#allocation7 + $0x20] sm:$0xff]
    %v387 = vld [vmem:[#allocation7 + $0x28] sm:$0xff]
    %v388 = vld [vmem:[#allocation7 + $0x30] sm:$0xff]
    %v389 = vld [vmem:[#allocation7 + $0x38] sm:$0xff]
    %v390 = vld [vmem:[#allocation7 + $0x40] sm:$0xff]
    %v391 = vld [vmem:[#allocation7 + $0x48] sm:$0xff]
    %v392 = vld [vmem:[#allocation7 + $0x50] sm:$0xff]
    %v393 = vld [vmem:[#allocation7 + $0x58] sm:$0xff]
    %v394 = vld [vmem:[#allocation7 + $0x60] sm:$0xff]
    %v395 = vld [vmem:[#allocation7 + $0x68] sm:$0xff]
    %v396 = vld [vmem:[#allocation7 + $0x70] sm:$0xff]
    %v397 = vld [vmem:[#allocation7 + $0x78] sm:$0xff]
    %v398 = vld [vmem:[%s8] sm:$0x1]
    %v400 = vlaneseq
    %v401 = vshrl.u32 %v400, 7
    %v402 = vsub.s32 0, %v401
    %v403 = vrot.slane %v398, %v402
    %405 = vmatprep.subr.mxu0 0.0
    %406 = vmatpush1.msra.mxu0 %v397
    %407 = vmatprep.subr.mxu0 0.0
    %408 = vmatpush1.msra.mxu0 %v396
    %409 = vmatprep.subr.mxu0 0.0
    %410 = vmatpush1.msra.mxu0 %v395
    %411 = vmatprep.subr.mxu0 0.0
    %412 = vmatpush1.msra.mxu0 %v394
    %413 = vmatprep.subr.mxu0 0.0
    %414 = vmatpush1.msra.mxu0 %v393
    %415 = vmatprep.subr.mxu0 0.0
    %416 = vmatpush1.msra.mxu0 %v392
    %417 = vmatprep.subr.mxu0 0.0
    %418 = vmatpush1.msra.mxu0 %v391
    %419 = vmatprep.subr.mxu0 0.0
    %420 = vmatpush1.msra.mxu0 %v390
    %421 = vmatprep.subr.mxu0 0.0
    %422 = vmatpush1.msra.mxu0 %v389
    %423 = vmatprep.subr.mxu0 0.0
    %424 = vmatpush1.msra.mxu0 %v388
    %425 = vmatprep.subr.mxu0 0.0
    %426 = vmatpush1.msra.mxu0 %v387
    %427 = vmatprep.subr.mxu0 0.0
    %428 = vmatpush1.msra.mxu0 %v386
    %429 = vmatprep.subr.mxu0 0.0
    %430 = vmatpush1.msra.mxu0 %v385
    %431 = vmatprep.subr.mxu0 0.0
    %432 = vmatpush1.msra.mxu0 %v384
    %433 = vmatprep.subr.mxu0 0.0
    %434 = vmatpush1.msra.mxu0 %v383
    %435 = vmatprep.subr.mxu0 0.0
    %436 = vmatpush1.msra.mxu0 %v382
    %437 = vmatprep.subr.mxu0 0.0
    %438 = vmatpush2.msra.mxu0 0.0
    %439 = vmatprep.subr.mxu0 0.0
    %440 = vmatpush2.msra.mxu0 0.0
    %441 = vmatprep.subr.mxu0 0.0
    %442 = vmatpush2.msra.mxu0 0.0
    %443 = vmatprep.subr.mxu0 0.0
    %444 = vmatpush2.msra.mxu0 0.0
    %445 = vmatprep.subr.mxu0 0.0
    %446 = vmatpush2.msra.mxu0 0.0
    %447 = vmatprep.subr.mxu0 0.0
    %448 = vmatpush2.msra.mxu0 0.0
    %449 = vmatprep.subr.mxu0 0.0
    %450 = vmatpush2.msra.mxu0 0.0
    %451 = vmatprep.subr.mxu0 0.0
    %452 = vmatpush2.msra.mxu0 0.0
    %453 = vmatprep.subr.mxu0 0.0
    %454 = vmatpush2.msra.mxu0 0.0
    %455 = vmatprep.subr.mxu0 0.0
    %456 = vmatpush2.msra.mxu0 0.0
    %457 = vmatprep.subr.mxu0 0.0
    %458 = vmatpush2.msra.mxu0 0.0
    %459 = vmatprep.subr.mxu0 0.0
    %460 = vmatpush2.msra.mxu0 0.0
    %461 = vmatprep.subr.mxu0 0.0
    %462 = vmatpush2.msra.mxu0 0.0
    %463 = vmatprep.subr.mxu0 0.0
    %464 = vmatpush2.msra.mxu0 0.0
    %465 = vmatprep.subr.mxu0 0.0
    %466 = vmatpush2.msra.mxu0 0.0
    %467 = vmatprep.subr.mxu0 0.0
    %468 = vmatpush2.msra.mxu0 0.0
    %469 = vmatprep.mubr.f32.mxu0 0.0
    %470 = vmatmul.mubr.f32.gmra.mxu0 %v381
    %v471 = vpop.f32.mrf.mxu0
    %v472 = vadd.f32 %v403, %v471
    %v473 = vpop.f32.mrf.mxu0
    %474 = vdwg.mxu0
    %vm475 = vcmp.gt.f32.partialorder %v472, 0.0
    %v476 = vmul.f32 %v472, 1.442695
    %v477 = vpow.pop %v476
    %v478 = vsub.f32 %v477, 1.0
    %v479 = vsel %vm475, %v472, %v478
    %480 = vst [vmem:[%s9] sm:$0xff] %v479
    // Predicated region
    $region54: #{regression_net2_forward.1} parent=1 // pred_check
      _
    $region55: #{regression_net2_forward.1} parent=1 // pred_check_branch
      %482 = sbr.rel (0) target = $region57
    $region56: #{regression_net2_forward.1} parent=1 // pred_region
      _
    $region57: #{regression_net2_forward.1} parent=1 // pred_fallthru
      _
    // Predicated region
    $region58: #{regression_net2_forward.1} parent=1 // pred_check
      _
    $region59: #{regression_net2_forward.1} parent=1 // pred_check_branch
      %484 = sbr.rel (0) target = $region61
    $region60: #{regression_net2_forward.1} parent=1 // pred_region
      _
    $region61: #{regression_net2_forward.1} parent=1 // pred_fallthru
      _
    %485 = vsyncpa [#allocation3], 1
    %486 = vsyncpa [#allocation5], 1
    %487 = vsyncpa [#allocation8], 1

</llo_original>
